<compile_context>
chip_gen: v6e
topology: v6e:2x2x1
jax: 0.10.0
libtpu: 0.0.40
codegen_flags: <defaults>
</compile_context>

<pallas_src>
import jax
import jax.numpy as jnp
from jax.experimental import pallas as pl
from jax.experimental.pallas import tpu as pltpu


def qagent_forward_kernel(obs_ref, q_ref, action_ref, maxq_ref):
    """obs_ref: (TB, 1) int32, q_ref: (obs_n, act_n) f32,
       action_ref: (1, TB) int32, maxq_ref: (1, TB) f32."""
    obs_n, act_n = q_ref.shape
    tb = obs_ref.shape[0]

    # ---- one-hot gather on the (otherwise idle) MXU -----------------------
    obs_col = obs_ref[...]                                             # (TB, 1) i32
    s_iota = jax.lax.broadcasted_iota(jnp.int32, (tb, obs_n), 1)       # (TB, obs_n)
    onehot = jnp.where(s_iota == obs_col,
                       jnp.float32(1.0), jnp.float32(0.0))             # (TB, obs_n)
    # rows[b, a] = Q[obs[b], a]; HIGHEST precision => exact f32 gather.
    # (If the Q-table were bf16, a bf16 one-hot would keep the v5e MXU fast path.)
    rows = jnp.dot(onehot, q_ref[...],
                   preferred_element_type=jnp.float32,
                   precision=jax.lax.Precision.HIGHEST)                # (TB, act_n)

    # ---- max + first-index argmax (one compare mask, lane reductions) -----
    maxq_col = jnp.max(rows, axis=1, keepdims=True)                    # (TB, 1)
    a_iota = jax.lax.broadcasted_iota(jnp.int32, (tb, act_n), 1).astype(jnp.float32)
    tied = jnp.where(rows == maxq_col, a_iota, jnp.float32(act_n))
    act_col = jnp.min(tied, axis=1, keepdims=True)                     # (TB, 1) f32 (small ints, exact)

    # ---- lane-dense writeback: (TB, 1) column -> (1, TB) row --------------
    # Diagonal-select transpose: broadcast the column across lanes, keep only
    # the diagonal, sum over sublanes.  All ops are plain VPU/XLU primitives,
    # and the HBM writeback becomes one contiguous lane-dense store per output
    # instead of a sublane-strided masked store.
    eye = (jax.lax.broadcasted_iota(jnp.int32, (tb, tb), 0) ==
           jax.lax.broadcasted_iota(jnp.int32, (tb, tb), 1))           # (TB, TB) bool
    maxq_row = jnp.sum(jnp.where(eye, maxq_col, jnp.float32(0.0)),
                       axis=0, keepdims=True)                          # (1, TB) f32
    act_row = jnp.sum(jnp.where(eye, act_col, jnp.float32(0.0)),
                      axis=0, keepdims=True)                           # (1, TB) f32

    maxq_ref[...] = maxq_row
    action_ref[...] = act_row.astype(jnp.int32)


def _pick_batch_tile(batch):
    # One grid step for small batches; tile large batches so the (TB, TB)
    # diag-select stays within a few vregs and the grid axis can be split
    # across v7x's two TensorCores.
    if batch % 128 == 0:
        return 128
    return batch


def qagent_forward(Q, obs, *, batch_tile=None):
    """Returns (action[B] int32, maxQ[B] float32) for a batch of observations."""
    obs_n, act_n = Q.shape
    batch = obs.shape[0]

    # Explicit dtype contract (no silent wrapper-side upcasts).
    if Q.dtype != jnp.float32:
        raise TypeError(f"Q must be float32, got {Q.dtype}")
    obs_i = obs if obs.dtype == jnp.int32 else obs.astype(jnp.int32)
    obs_col = obs_i.reshape(batch, 1)          # metadata-only reshape

    tb = batch_tile or _pick_batch_tile(batch)
    assert batch % tb == 0, (batch, tb)
    grid = (batch // tb,)

    cost = pl.CostEstimate(
        flops=2 * batch * obs_n * act_n,
        transcendentals=0,
        bytes_accessed=obs_n * act_n * 4 + batch * 4 + 2 * batch * 4,
    )

    grid_spec = pltpu.PrefetchScalarGridSpec(
        num_scalar_prefetch=0,
        grid=grid,
        in_specs=[
            pl.BlockSpec((tb, 1), lambda i: (i, 0)),           # obs batch tile
            pl.BlockSpec((obs_n, act_n), lambda i: (0, 0)),    # full Q table, VMEM-resident
        ],
        out_specs=[
            pl.BlockSpec((1, tb), lambda i: (0, i)),           # action, lane-dense
            pl.BlockSpec((1, tb), lambda i: (0, i)),           # maxQ, lane-dense
        ],
    )

    action_row, maxq_row = pl.pallas_call(
        qagent_forward_kernel,
        grid_spec=grid_spec,
        out_shape=(jax.ShapeDtypeStruct((1, batch), jnp.int32),
                   jax.ShapeDtypeStruct((1, batch), jnp.float32)),
        compiler_params=pltpu.CompilerParams(
            dimension_semantics=("parallel",)),
        cost_estimate=cost,
    )(obs_col, Q)

    return action_row[0], maxq_row[0]


if __name__ == "__main__":
    obs_n, act_n, B = 16, 8, 8

    key = jax.random.PRNGKey(0)
    kq, ko = jax.random.split(key)

    # nn.Parameter(torch.zeros(...)) would make every action tie; use random
    # values so the argmax is meaningful.  Values are rounded to bf16-exact
    # f32 so the gather is bit-exact regardless of MXU precision path.
    Q = jax.random.normal(kq, (obs_n, act_n), dtype=jnp.float32)
    Q = Q.astype(jnp.bfloat16).astype(jnp.float32)
    obs = jax.random.randint(ko, (B,), 0, obs_n, dtype=jnp.int32)

    action, maxq = qagent_forward(Q, obs)
    action = jax.block_until_ready(action)
    maxq = jax.block_until_ready(maxq)

    # Plain-JAX reference: Q[obs, :].max() and first-index argmax.
    rows_ref = Q[obs, :]
    ref_action = jnp.argmax(rows_ref, axis=-1).astype(jnp.int32)
    ref_maxq = jnp.max(rows_ref, axis=-1)

    assert jnp.array_equal(action, ref_action), (action, ref_action)
    assert jnp.allclose(maxq, ref_maxq), (maxq, ref_maxq)

    print("KERNEL_OK")
</pallas_src>

<mosaic_0001>
module attributes {stable_mosaic.version = 11 : i64} {
  func.func @qagent_forward_kernel(%arg0: i32, %arg1: memref<8x1xi32, #tpu.memory_space<vmem>>, %arg2: memref<16x8xf32, #tpu.memory_space<vmem>>, %arg3: memref<1x8xi32, #tpu.memory_space<vmem>>, %arg4: memref<1x8xf32, #tpu.memory_space<vmem>>) attributes {dimension_semantics = [#tpu.dimension_semantics<parallel>], iteration_bounds = array<i64: 1>, scalar_prefetch = 0 : i64, scratch_operands = 0 : i64, tpu.core_type = #tpu.core_type<tc>, window_params = [{transform_indices = @transform_0, window_bounds = array<i64: 8, 1>}, {pipeline_mode = #tpu.pipeline_mode<synchronous>, transform_indices = @transform_1, window_bounds = array<i64: 16, 8>}, {transform_indices = @transform_2, window_bounds = array<i64: 1, 8>}, {transform_indices = @transform_3, window_bounds = array<i64: 1, 8>}]} {
    %c0 = arith.constant 0 : index
    %c0_0 = arith.constant 0 : index
    %0 = vector.load %arg1[%c0, %c0_0] : memref<8x1xi32, #tpu.memory_space<vmem>>, vector<8x1xi32>
    %1 = tpu.iota {dimensions = array<i32: 1>} : vector<8x16xi32>
    %2 = vector.broadcast %0 : vector<8x1xi32> to vector<8x16xi32>
    %3 = arith.cmpi eq, %1, %2 : vector<8x16xi32>
    %cst = arith.constant 1.000000e+00 : f32
    %cst_1 = arith.constant 0.000000e+00 : f32
    %4 = vector.broadcast %cst : f32 to vector<8x16xf32>
    %5 = vector.broadcast %cst_1 : f32 to vector<8x16xf32>
    %6 = arith.select %3, %4, %5 : vector<8x16xi1>, vector<8x16xf32>
    %c0_2 = arith.constant 0 : index
    %c0_3 = arith.constant 0 : index
    %7 = vector.load %arg2[%c0_2, %c0_3] : memref<16x8xf32, #tpu.memory_space<vmem>>, vector<16x8xf32>
    %cst_4 = arith.constant dense<0.000000e+00> : vector<8x8xf32>
    %8 = tpu.matmul %6, %7, %cst_4 {dimension_numbers = #tpu.dot_dimension_numbers<[1], [0], [0], [1], [0, 0, 1, 1], [], []>, precision = #tpu.contract_precision<fp32>} : vector<8x16xf32>, vector<16x8xf32>, vector<8x8xf32> -> vector<8x8xf32>
    %cst_5 = arith.constant dense<0xFF800000> : vector<8xf32>
    %9 = vector.multi_reduction <maximumf>, %8, %cst_5 [1] : vector<8x8xf32> to vector<8xf32>
    %10 = vector.shape_cast %9 : vector<8xf32> to vector<8x1xf32>
    %11 = tpu.iota {dimensions = array<i32: 1>} : vector<8x8xi32>
    %12 = arith.sitofp %11 : vector<8x8xi32> to vector<8x8xf32>
    %13 = vector.broadcast %10 : vector<8x1xf32> to vector<8x8xf32>
    %14 = arith.cmpf oeq, %8, %13 : vector<8x8xf32>
    %cst_6 = arith.constant 8.000000e+00 : f32
    %15 = vector.broadcast %cst_6 : f32 to vector<8x8xf32>
    %16 = arith.select %14, %12, %15 : vector<8x8xi1>, vector<8x8xf32>
    %cst_7 = arith.constant dense<0x7F800000> : vector<8xf32>
    %17 = vector.multi_reduction <minimumf>, %16, %cst_7 [1] : vector<8x8xf32> to vector<8xf32>
    %18 = vector.shape_cast %17 : vector<8xf32> to vector<8x1xf32>
    %19 = tpu.iota {dimensions = array<i32: 0>} : vector<8x8xi32>
    %20 = tpu.iota {dimensions = array<i32: 1>} : vector<8x8xi32>
    %21 = arith.cmpi eq, %19, %20 : vector<8x8xi32>
    %cst_8 = arith.constant 0.000000e+00 : f32
    %22 = vector.shape_cast %10 : vector<8x1xf32> to vector<8x1xf32>
    %23 = vector.broadcast %22 : vector<8x1xf32> to vector<8x8xf32>
    %24 = vector.broadcast %cst_8 : f32 to vector<8x8xf32>
    %25 = arith.select %21, %23, %24 : vector<8x8xi1>, vector<8x8xf32>
    %cst_9 = arith.constant dense<0.000000e+00> : vector<8xf32>
    %26 = vector.multi_reduction <add>, %25, %cst_9 [0] : vector<8x8xf32> to vector<8xf32>
    %27 = vector.shape_cast %26 : vector<8xf32> to vector<1x8xf32>
    %cst_10 = arith.constant 0.000000e+00 : f32
    %28 = vector.shape_cast %18 : vector<8x1xf32> to vector<8x1xf32>
    %29 = vector.broadcast %28 : vector<8x1xf32> to vector<8x8xf32>
    %30 = vector.broadcast %cst_10 : f32 to vector<8x8xf32>
    %31 = arith.select %21, %29, %30 : vector<8x8xi1>, vector<8x8xf32>
    %cst_11 = arith.constant dense<0.000000e+00> : vector<8xf32>
    %32 = vector.multi_reduction <add>, %31, %cst_11 [0] : vector<8x8xf32> to vector<8xf32>
    %33 = vector.shape_cast %32 : vector<8xf32> to vector<1x8xf32>
    %c0_12 = arith.constant 0 : index
    %c0_13 = arith.constant 0 : index
    %34 = vector.load %arg4[%c0_12, %c0_13] : memref<1x8xf32, #tpu.memory_space<vmem>>, vector<1x8xf32>
    tpu.vector_store %arg4[%c0_12, %c0_13], %27 {strides = array<i32>} : memref<1x8xf32, #tpu.memory_space<vmem>>, vector<1x8xf32>,
    %35 = arith.fptosi %33 : vector<1x8xf32> to vector<1x8xi32>
    %c0_14 = arith.constant 0 : index
    %c0_15 = arith.constant 0 : index
    %36 = vector.load %arg3[%c0_14, %c0_15] : memref<1x8xi32, #tpu.memory_space<vmem>>, vector<1x8xi32>
    tpu.vector_store %arg3[%c0_14, %c0_15], %35 {strides = array<i32>} : memref<1x8xi32, #tpu.memory_space<vmem>>, vector<1x8xi32>,
    return
  }
  func.func @transform_0(%arg0: i32) -> (i32, i32) {
    %c0_i32 = arith.constant 0 : i32
    %c0_i32_0 = arith.constant 0 : i32
    return %arg0, %c0_i32 : i32, i32
  }
  func.func @transform_1(%arg0: i32) -> (i32, i32) {
    %c0_i32 = arith.constant 0 : i32
    %c0_i32_0 = arith.constant 0 : i32
    %c0_i32_1 = arith.constant 0 : i32
    return %c0_i32, %c0_i32_0 : i32, i32
  }
  func.func @transform_2(%arg0: i32) -> (i32, i32) {
    %c0_i32 = arith.constant 0 : i32
    %c0_i32_0 = arith.constant 0 : i32
    return %c0_i32, %arg0 : i32, i32
  }
  func.func @transform_3(%arg0: i32) -> (i32, i32) {
    %c0_i32 = arith.constant 0 : i32
    %c0_i32_0 = arith.constant 0 : i32
    return %c0_i32, %arg0 : i32, i32
  }
}

</mosaic_0001>

<llo_original>
// kernel: tpu_custom_call.1
$region0: #{tpu_custom_call.1}
  #allocation0 [shape = 'u32[]', space=smem, size = 0x4, offset = 0x4, fixed_abs, tag = 'smem constant byte address 0x4 - core index']
  #allocation1 [shape = 'u32[144,128]{1,0:T(1,128)}', space=vmem, size = 0x12000, scoped, tag = 'internal scratch']
  %s0 = inlined_call_operand.vmem [shape: s32[8,1], index: 0, kind: input, shape index: {}]
  %s1 = inlined_call_operand.vmem [shape: f32[16,8], index: 1, kind: input, shape index: {}]
  %s2 = inlined_call_operand.hbm [shape: s32[1,8], index: 2, kind: output, shape index: {0}]
  %s3 = inlined_call_operand.hbm [shape: f32[1,8], index: 3, kind: output, shape index: {1}]
  %4 = xla_tuple %s2, %s3
  %s5 = sld [smem:[#allocation0]]
  $region26: #{tpu_custom_call.1} parent=0
    _
  %s7 = ssub.s32 1, %s5
  %s8 = scalar_select 0, %s7, %s5
  $region1: #{tpu_custom_call.1} parent=0
    #allocation2 [shape = 'u8[512]{0}', space=vmem, size = 0x400, scoped, tag = 'output window, operand 0, single buffered']
    #allocation3 [shape = 's32[1]{0}', space=sflag, size = 0x4, scoped, tag = 'scoped memory for tpu_custom_call.1']
    #allocation4 [shape = 'u8[512]{0}', space=vmem, size = 0x400, scoped, tag = 'output window, operand 1, single buffered']
    #allocation5 [shape = 's32[1]{0}', space=sflag, size = 0x4, scoped, tag = 'scoped memory for tpu_custom_call.1']
    %9 = vsyncpa [#allocation3], 0
    %10 = vsyncpa [#allocation5], 0
    // Predicated region
    $region2: #{tpu_custom_call.1} parent=1 // pred_check
      _
    $region3: #{tpu_custom_call.1} parent=1 // pred_check_branch
      %12 = sbr.rel (0) target = $region5
    $region4: #{tpu_custom_call.1} parent=1 // pred_region
      _
    $region5: #{tpu_custom_call.1} parent=1 // pred_fallthru
      _
    // Predicated region
    $region6: #{tpu_custom_call.1} parent=1 // pred_check
      _
    $region7: #{tpu_custom_call.1} parent=1 // pred_check_branch
      %14 = sbr.rel (0) target = $region9
    $region8: #{tpu_custom_call.1} parent=1 // pred_region
      _
    $region9: #{tpu_custom_call.1} parent=1 // pred_fallthru
      _
    %v15 = vld [vmem:[%s0] sm:$0xff]
    %v16 = vlaneseq
    %v17 = vand.u32 %v16, 127
    %18 = vset.pattern.permute.xlu0 0
    %19 = vperm.xlu0 %18, %v15
    %v20 = vpop.permute.xlu0 %19
    %vm21 = vcmp.eq.s32.totalorder %v17, %v20
    %v22 = vsel %vm21, 1.0, 0.0
    %v23 = vld [vmem:[%s1] sm:$0xff]
    %v24 = vld [vmem:[%s1 + $0x8] sm:$0xff]
    %vm25 = vcmask 130048
    %v27 = vsel %vm25, %v22, 0
    %29 = vmatprep.subr.mxu0 0.0
    %30 = vmatpush1.msra.mxu0 0.0
    %31 = vmatprep.subr.mxu0 0.0
    %32 = vmatpush1.msra.mxu0 0.0
    %33 = vmatprep.subr.mxu0 0.0
    %34 = vmatpush1.msra.mxu0 0.0
    %35 = vmatprep.subr.mxu0 0.0
    %36 = vmatpush1.msra.mxu0 0.0
    %37 = vmatprep.subr.mxu0 0.0
    %38 = vmatpush1.msra.mxu0 0.0
    %39 = vmatprep.subr.mxu0 0.0
    %40 = vmatpush1.msra.mxu0 0.0
    %41 = vmatprep.subr.mxu0 0.0
    %42 = vmatpush1.msra.mxu0 0.0
    %43 = vmatprep.subr.mxu0 0.0
    %44 = vmatpush1.msra.mxu0 0.0
    %45 = vmatprep.subr.mxu0 0.0
    %46 = vmatpush1.msra.mxu0 0.0
    %47 = vmatprep.subr.mxu0 0.0
    %48 = vmatpush1.msra.mxu0 0.0
    %49 = vmatprep.subr.mxu0 0.0
    %50 = vmatpush1.msra.mxu0 0.0
    %51 = vmatprep.subr.mxu0 0.0
    %52 = vmatpush1.msra.mxu0 0.0
    %53 = vmatprep.subr.mxu0 0.0
    %54 = vmatpush1.msra.mxu0 0.0
    %55 = vmatprep.subr.mxu0 0.0
    %56 = vmatpush1.msra.mxu0 0.0
    %57 = vmatprep.subr.mxu0 0.0
    %v58 = vand.u32 %v24, 4294901760
    %59 = vmatpush1.msra.mxu0 %v58
    %60 = vmatprep.subr.mxu0 0.0
    %v61 = vand.u32 %v23, 4294901760
    %62 = vmatpush1.msra.mxu0 %v61
    %63 = vmatprep.subr.mxu0 0.0
    %64 = vmatpush2.msra.mxu0 0.0
    %65 = vmatprep.subr.mxu0 0.0
    %66 = vmatpush2.msra.mxu0 0.0
    %67 = vmatprep.subr.mxu0 0.0
    %68 = vmatpush2.msra.mxu0 0.0
    %69 = vmatprep.subr.mxu0 0.0
    %70 = vmatpush2.msra.mxu0 0.0
    %71 = vmatprep.subr.mxu0 0.0
    %72 = vmatpush2.msra.mxu0 0.0
    %73 = vmatprep.subr.mxu0 0.0
    %74 = vmatpush2.msra.mxu0 0.0
    %75 = vmatprep.subr.mxu0 0.0
    %76 = vmatpush2.msra.mxu0 0.0
    %77 = vmatprep.subr.mxu0 0.0
    %78 = vmatpush2.msra.mxu0 0.0
    %79 = vmatprep.subr.mxu0 0.0
    %80 = vmatpush2.msra.mxu0 0.0
    %81 = vmatprep.subr.mxu0 0.0
    %82 = vmatpush2.msra.mxu0 0.0
    %83 = vmatprep.subr.mxu0 0.0
    %84 = vmatpush2.msra.mxu0 0.0
    %85 = vmatprep.subr.mxu0 0.0
    %86 = vmatpush2.msra.mxu0 0.0
    %87 = vmatprep.subr.mxu0 0.0
    %88 = vmatpush2.msra.mxu0 0.0
    %89 = vmatprep.subr.mxu0 0.0
    %90 = vmatpush2.msra.mxu0 0.0
    %91 = vmatprep.subr.mxu0 0.0
    %92 = vmatpush2.msra.mxu0 0.0
    %93 = vmatprep.subr.mxu0 0.0
    %94 = vmatpush2.msra.mxu0 0.0
    %95 = vmatprep.mubr.f32.mxu0 0.0
    %v96 = vand.u32 %v27, 4294901760
    %v97 = vsub.f32 %v27, %v96
    %v98 = vand.u32 %v97, 4294901760
    %v99 = vsub.f32 %v97, %v98
    %v100 = vand.u32 %v99, 4294901760
    %101 = vmatmul.mubr.f32.gmra.mxu0 %v100
    %v102 = vpop.f32.mrf.mxu0
    %v103 = vadd.f32 0.0, %v102
    %v104 = vpop.f32.mrf.mxu0
    %105 = vdwg.mxu0
    %106 = vmatprep.subr.mxu0 0.0
    %107 = vmatpush1.msra.mxu0 0.0
    %108 = vmatprep.subr.mxu0 0.0
    %109 = vmatpush1.msra.mxu0 0.0
    %110 = vmatprep.subr.mxu0 0.0
    %111 = vmatpush1.msra.mxu0 0.0
    %112 = vmatprep.subr.mxu0 0.0
    %113 = vmatpush1.msra.mxu0 0.0
    %114 = vmatprep.subr.mxu0 0.0
    %115 = vmatpush1.msra.mxu0 0.0
    %116 = vmatprep.subr.mxu0 0.0
    %117 = vmatpush1.msra.mxu0 0.0
    %118 = vmatprep.subr.mxu0 0.0
    %119 = vmatpush1.msra.mxu0 0.0
    %120 = vmatprep.subr.mxu0 0.0
    %121 = vmatpush1.msra.mxu0 0.0
    %122 = vmatprep.subr.mxu0 0.0
    %123 = vmatpush1.msra.mxu0 0.0
    %124 = vmatprep.subr.mxu0 0.0
    %125 = vmatpush1.msra.mxu0 0.0
    %126 = vmatprep.subr.mxu0 0.0
    %127 = vmatpush1.msra.mxu0 0.0
    %128 = vmatprep.subr.mxu0 0.0
    %129 = vmatpush1.msra.mxu0 0.0
    %130 = vmatprep.subr.mxu0 0.0
    %131 = vmatpush1.msra.mxu0 0.0
    %132 = vmatprep.subr.mxu0 0.0
    %133 = vmatpush1.msra.mxu0 0.0
    %134 = vmatprep.subr.mxu0 0.0
    %v135 = vand.u32 %v24, 4294901760
    %v136 = vsub.f32 %v24, %v135
    %v137 = vand.u32 %v136, 4294901760
    %v138 = vsub.f32 %v136, %v137
    %v139 = vand.u32 %v138, 4294901760
    %140 = vmatpush1.msra.mxu0 %v139
    %141 = vmatprep.subr.mxu0 0.0
    %v142 = vand.u32 %v23, 4294901760
    %v143 = vsub.f32 %v23, %v142
    %v144 = vand.u32 %v143, 4294901760
    %v145 = vsub.f32 %v143, %v144
    %v146 = vand.u32 %v145, 4294901760
    %147 = vmatpush1.msra.mxu0 %v146
    %148 = vmatprep.subr.mxu0 0.0
    %149 = vmatpush2.msra.mxu0 0.0
    %150 = vmatprep.subr.mxu0 0.0
    %151 = vmatpush2.msra.mxu0 0.0
    %152 = vmatprep.subr.mxu0 0.0
    %153 = vmatpush2.msra.mxu0 0.0
    %154 = vmatprep.subr.mxu0 0.0
    %155 = vmatpush2.msra.mxu0 0.0
    %156 = vmatprep.subr.mxu0 0.0
    %157 = vmatpush2.msra.mxu0 0.0
    %158 = vmatprep.subr.mxu0 0.0
    %159 = vmatpush2.msra.mxu0 0.0
    %160 = vmatprep.subr.mxu0 0.0
    %161 = vmatpush2.msra.mxu0 0.0
    %162 = vmatprep.subr.mxu0 0.0
    %163 = vmatpush2.msra.mxu0 0.0
    %164 = vmatprep.subr.mxu0 0.0
    %165 = vmatpush2.msra.mxu0 0.0
    %166 = vmatprep.subr.mxu0 0.0
    %167 = vmatpush2.msra.mxu0 0.0
    %168 = vmatprep.subr.mxu0 0.0
    %169 = vmatpush2.msra.mxu0 0.0
    %170 = vmatprep.subr.mxu0 0.0
    %171 = vmatpush2.msra.mxu0 0.0
    %172 = vmatprep.subr.mxu0 0.0
    %173 = vmatpush2.msra.mxu0 0.0
    %174 = vmatprep.subr.mxu0 0.0
    %175 = vmatpush2.msra.mxu0 0.0
    %176 = vmatprep.subr.mxu0 0.0
    %177 = vmatpush2.msra.mxu0 0.0
    %178 = vmatprep.subr.mxu0 0.0
    %179 = vmatpush2.msra.mxu0 0.0
    %180 = vmatprep.mubr.f32.mxu0 0.0
    %v181 = vand.u32 %v27, 4294901760
    %182 = vmatmul.mubr.f32.gmra.mxu0 %v181
    %v183 = vpop.f32.mrf.mxu0
    %v184 = vadd.f32 %v103, %v183
    %v185 = vpop.f32.mrf.mxu0
    %186 = vdwg.mxu0
    %187 = vmatprep.subr.mxu0 0.0
    %188 = vmatpush1.msra.mxu0 0.0
    %189 = vmatprep.subr.mxu0 0.0
    %190 = vmatpush1.msra.mxu0 0.0
    %191 = vmatprep.subr.mxu0 0.0
    %192 = vmatpush1.msra.mxu0 0.0
    %193 = vmatprep.subr.mxu0 0.0
    %194 = vmatpush1.msra.mxu0 0.0
    %195 = vmatprep.subr.mxu0 0.0
    %196 = vmatpush1.msra.mxu0 0.0
    %197 = vmatprep.subr.mxu0 0.0
    %198 = vmatpush1.msra.mxu0 0.0
    %199 = vmatprep.subr.mxu0 0.0
    %200 = vmatpush1.msra.mxu0 0.0
    %201 = vmatprep.subr.mxu0 0.0
    %202 = vmatpush1.msra.mxu0 0.0
    %203 = vmatprep.subr.mxu0 0.0
    %204 = vmatpush1.msra.mxu0 0.0
    %205 = vmatprep.subr.mxu0 0.0
    %206 = vmatpush1.msra.mxu0 0.0
    %207 = vmatprep.subr.mxu0 0.0
    %208 = vmatpush1.msra.mxu0 0.0
    %209 = vmatprep.subr.mxu0 0.0
    %210 = vmatpush1.msra.mxu0 0.0
    %211 = vmatprep.subr.mxu0 0.0
    %212 = vmatpush1.msra.mxu0 0.0
    %213 = vmatprep.subr.mxu0 0.0
    %214 = vmatpush1.msra.mxu0 0.0
    %215 = vmatprep.subr.mxu0 0.0
    %v216 = vand.u32 %v24, 4294901760
    %v217 = vsub.f32 %v24, %v216
    %218 = vmatpush1.msra.mxu0 %v217
    %219 = vmatprep.subr.mxu0 0.0
    %v220 = vand.u32 %v23, 4294901760
    %v221 = vsub.f32 %v23, %v220
    %222 = vmatpush1.msra.mxu0 %v221
    %223 = vmatprep.subr.mxu0 0.0
    %224 = vmatpush2.msra.mxu0 0.0
    %225 = vmatprep.subr.mxu0 0.0
    %226 = vmatpush2.msra.mxu0 0.0
    %227 = vmatprep.subr.mxu0 0.0
    %228 = vmatpush2.msra.mxu0 0.0
    %229 = vmatprep.subr.mxu0 0.0
    %230 = vmatpush2.msra.mxu0 0.0
    %231 = vmatprep.subr.mxu0 0.0
    %232 = vmatpush2.msra.mxu0 0.0
    %233 = vmatprep.subr.mxu0 0.0
    %234 = vmatpush2.msra.mxu0 0.0
    %235 = vmatprep.subr.mxu0 0.0
    %236 = vmatpush2.msra.mxu0 0.0
    %237 = vmatprep.subr.mxu0 0.0
    %238 = vmatpush2.msra.mxu0 0.0
    %239 = vmatprep.subr.mxu0 0.0
    %240 = vmatpush2.msra.mxu0 0.0
    %241 = vmatprep.subr.mxu0 0.0
    %242 = vmatpush2.msra.mxu0 0.0
    %243 = vmatprep.subr.mxu0 0.0
    %244 = vmatpush2.msra.mxu0 0.0
    %245 = vmatprep.subr.mxu0 0.0
    %246 = vmatpush2.msra.mxu0 0.0
    %247 = vmatprep.subr.mxu0 0.0
    %248 = vmatpush2.msra.mxu0 0.0
    %249 = vmatprep.subr.mxu0 0.0
    %250 = vmatpush2.msra.mxu0 0.0
    %251 = vmatprep.subr.mxu0 0.0
    %252 = vmatpush2.msra.mxu0 0.0
    %253 = vmatprep.subr.mxu0 0.0
    %254 = vmatpush2.msra.mxu0 0.0
    %255 = vmatprep.mubr.f32.mxu0 0.0
    %v256 = vand.u32 %v27, 4294901760
    %v257 = vsub.f32 %v27, %v256
    %258 = vmatmul.mubr.f32.gmra.mxu0 %v257
    %v259 = vpop.f32.mrf.mxu0
    %v260 = vadd.f32 %v184, %v259
    %v261 = vpop.f32.mrf.mxu0
    %262 = vdwg.mxu0
    %263 = vmatprep.subr.mxu0 0.0
    %264 = vmatpush1.msra.mxu0 0.0
    %265 = vmatprep.subr.mxu0 0.0
    %266 = vmatpush1.msra.mxu0 0.0
    %267 = vmatprep.subr.mxu0 0.0
    %268 = vmatpush1.msra.mxu0 0.0
    %269 = vmatprep.subr.mxu0 0.0
    %270 = vmatpush1.msra.mxu0 0.0
    %271 = vmatprep.subr.mxu0 0.0
    %272 = vmatpush1.msra.mxu0 0.0
    %273 = vmatprep.subr.mxu0 0.0
    %274 = vmatpush1.msra.mxu0 0.0
    %275 = vmatprep.subr.mxu0 0.0
    %276 = vmatpush1.msra.mxu0 0.0
    %277 = vmatprep.subr.mxu0 0.0
    %278 = vmatpush1.msra.mxu0 0.0
    %279 = vmatprep.subr.mxu0 0.0
    %280 = vmatpush1.msra.mxu0 0.0
    %281 = vmatprep.subr.mxu0 0.0
    %282 = vmatpush1.msra.mxu0 0.0
    %283 = vmatprep.subr.mxu0 0.0
    %284 = vmatpush1.msra.mxu0 0.0
    %285 = vmatprep.subr.mxu0 0.0
    %286 = vmatpush1.msra.mxu0 0.0
    %287 = vmatprep.subr.mxu0 0.0
    %288 = vmatpush1.msra.mxu0 0.0
    %289 = vmatprep.subr.mxu0 0.0
    %290 = vmatpush1.msra.mxu0 0.0
    %291 = vmatprep.subr.mxu0 0.0
    %v292 = vand.u32 %v24, 4294901760
    %293 = vmatpush1.msra.mxu0 %v292
    %294 = vmatprep.subr.mxu0 0.0
    %v295 = vand.u32 %v23, 4294901760
    %296 = vmatpush1.msra.mxu0 %v295
    %297 = vmatprep.subr.mxu0 0.0
    %298 = vmatpush2.msra.mxu0 0.0
    %299 = vmatprep.subr.mxu0 0.0
    %300 = vmatpush2.msra.mxu0 0.0
    %301 = vmatprep.subr.mxu0 0.0
    %302 = vmatpush2.msra.mxu0 0.0
    %303 = vmatprep.subr.mxu0 0.0
    %304 = vmatpush2.msra.mxu0 0.0
    %305 = vmatprep.subr.mxu0 0.0
    %306 = vmatpush2.msra.mxu0 0.0
    %307 = vmatprep.subr.mxu0 0.0
    %308 = vmatpush2.msra.mxu0 0.0
    %309 = vmatprep.subr.mxu0 0.0
    %310 = vmatpush2.msra.mxu0 0.0
    %311 = vmatprep.subr.mxu0 0.0
    %312 = vmatpush2.msra.mxu0 0.0
    %313 = vmatprep.subr.mxu0 0.0
    %314 = vmatpush2.msra.mxu0 0.0
    %315 = vmatprep.subr.mxu0 0.0
    %316 = vmatpush2.msra.mxu0 0.0
    %317 = vmatprep.subr.mxu0 0.0
    %318 = vmatpush2.msra.mxu0 0.0
    %319 = vmatprep.subr.mxu0 0.0
    %320 = vmatpush2.msra.mxu0 0.0
    %321 = vmatprep.subr.mxu0 0.0
    %322 = vmatpush2.msra.mxu0 0.0
    %323 = vmatprep.subr.mxu0 0.0
    %324 = vmatpush2.msra.mxu0 0.0
    %325 = vmatprep.subr.mxu0 0.0
    %326 = vmatpush2.msra.mxu0 0.0
    %327 = vmatprep.subr.mxu0 0.0
    %328 = vmatpush2.msra.mxu0 0.0
    %329 = vmatprep.mubr.f32.mxu0 0.0
    %v330 = vand.u32 %v27, 4294901760
    %v331 = vsub.f32 %v27, %v330
    %v332 = vand.u32 %v331, 4294901760
    %333 = vmatmul.mubr.f32.gmra.mxu0 %v332
    %v334 = vpop.f32.mrf.mxu0
    %v335 = vadd.f32 %v260, %v334
    %v336 = vpop.f32.mrf.mxu0
    %337 = vdwg.mxu0
    %338 = vmatprep.subr.mxu0 0.0
    %339 = vmatpush1.msra.mxu0 0.0
    %340 = vmatprep.subr.mxu0 0.0
    %341 = vmatpush1.msra.mxu0 0.0
    %342 = vmatprep.subr.mxu0 0.0
    %343 = vmatpush1.msra.mxu0 0.0
    %344 = vmatprep.subr.mxu0 0.0
    %345 = vmatpush1.msra.mxu0 0.0
    %346 = vmatprep.subr.mxu0 0.0
    %347 = vmatpush1.msra.mxu0 0.0
    %348 = vmatprep.subr.mxu0 0.0
    %349 = vmatpush1.msra.mxu0 0.0
    %350 = vmatprep.subr.mxu0 0.0
    %351 = vmatpush1.msra.mxu0 0.0
    %352 = vmatprep.subr.mxu0 0.0
    %353 = vmatpush1.msra.mxu0 0.0
    %354 = vmatprep.subr.mxu0 0.0
    %355 = vmatpush1.msra.mxu0 0.0
    %356 = vmatprep.subr.mxu0 0.0
    %357 = vmatpush1.msra.mxu0 0.0
    %358 = vmatprep.subr.mxu0 0.0
    %359 = vmatpush1.msra.mxu0 0.0
    %360 = vmatprep.subr.mxu0 0.0
    %361 = vmatpush1.msra.mxu0 0.0
    %362 = vmatprep.subr.mxu0 0.0
    %363 = vmatpush1.msra.mxu0 0.0
    %364 = vmatprep.subr.mxu0 0.0
    %365 = vmatpush1.msra.mxu0 0.0
    %366 = vmatprep.subr.mxu0 0.0
    %v367 = vand.u32 %v24, 4294901760
    %v368 = vsub.f32 %v24, %v367
    %v369 = vand.u32 %v368, 4294901760
    %370 = vmatpush1.msra.mxu0 %v369
    %371 = vmatprep.subr.mxu0 0.0
    %v372 = vand.u32 %v23, 4294901760
    %v373 = vsub.f32 %v23, %v372
    %v374 = vand.u32 %v373, 4294901760
    %375 = vmatpush1.msra.mxu0 %v374
    %376 = vmatprep.subr.mxu0 0.0
    %377 = vmatpush2.msra.mxu0 0.0
    %378 = vmatprep.subr.mxu0 0.0
    %379 = vmatpush2.msra.mxu0 0.0
    %380 = vmatprep.subr.mxu0 0.0
    %381 = vmatpush2.msra.mxu0 0.0
    %382 = vmatprep.subr.mxu0 0.0
    %383 = vmatpush2.msra.mxu0 0.0
    %384 = vmatprep.subr.mxu0 0.0
    %385 = vmatpush2.msra.mxu0 0.0
    %386 = vmatprep.subr.mxu0 0.0
    %387 = vmatpush2.msra.mxu0 0.0
    %388 = vmatprep.subr.mxu0 0.0
    %389 = vmatpush2.msra.mxu0 0.0
    %390 = vmatprep.subr.mxu0 0.0
    %391 = vmatpush2.msra.mxu0 0.0
    %392 = vmatprep.subr.mxu0 0.0
    %393 = vmatpush2.msra.mxu0 0.0
    %394 = vmatprep.subr.mxu0 0.0
    %395 = vmatpush2.msra.mxu0 0.0
    %396 = vmatprep.subr.mxu0 0.0
    %397 = vmatpush2.msra.mxu0 0.0
    %398 = vmatprep.subr.mxu0 0.0
    %399 = vmatpush2.msra.mxu0 0.0
    %400 = vmatprep.subr.mxu0 0.0
    %401 = vmatpush2.msra.mxu0 0.0
    %402 = vmatprep.subr.mxu0 0.0
    %403 = vmatpush2.msra.mxu0 0.0
    %404 = vmatprep.subr.mxu0 0.0
    %405 = vmatpush2.msra.mxu0 0.0
    %406 = vmatprep.subr.mxu0 0.0
    %407 = vmatpush2.msra.mxu0 0.0
    %408 = vmatprep.mubr.f32.mxu0 0.0
    %v409 = vand.u32 %v27, 4294901760
    %410 = vmatmul.mubr.f32.gmra.mxu0 %v409
    %v411 = vpop.f32.mrf.mxu0
    %v412 = vadd.f32 %v335, %v411
    %v413 = vpop.f32.mrf.mxu0
    %414 = vdwg.mxu0
    %415 = vmatprep.subr.mxu0 0.0
    %416 = vmatpush1.msra.mxu0 0.0
    %417 = vmatprep.subr.mxu0 0.0
    %418 = vmatpush1.msra.mxu0 0.0
    %419 = vmatprep.subr.mxu0 0.0
    %420 = vmatpush1.msra.mxu0 0.0
    %421 = vmatprep.subr.mxu0 0.0
    %422 = vmatpush1.msra.mxu0 0.0
    %423 = vmatprep.subr.mxu0 0.0
    %424 = vmatpush1.msra.mxu0 0.0
    %425 = vmatprep.subr.mxu0 0.0
    %426 = vmatpush1.msra.mxu0 0.0
    %427 = vmatprep.subr.mxu0 0.0
    %428 = vmatpush1.msra.mxu0 0.0
    %429 = vmatprep.subr.mxu0 0.0
    %430 = vmatpush1.msra.mxu0 0.0
    %431 = vmatprep.subr.mxu0 0.0
    %432 = vmatpush1.msra.mxu0 0.0
    %433 = vmatprep.subr.mxu0 0.0
    %434 = vmatpush1.msra.mxu0 0.0
    %435 = vmatprep.subr.mxu0 0.0
    %436 = vmatpush1.msra.mxu0 0.0
    %437 = vmatprep.subr.mxu0 0.0
    %438 = vmatpush1.msra.mxu0 0.0
    %439 = vmatprep.subr.mxu0 0.0
    %440 = vmatpush1.msra.mxu0 0.0
    %441 = vmatprep.subr.mxu0 0.0
    %442 = vmatpush1.msra.mxu0 0.0
    %443 = vmatprep.subr.mxu0 0.0
    %v444 = vand.u32 %v24, 4294901760
    %445 = vmatpush1.msra.mxu0 %v444
    %446 = vmatprep.subr.mxu0 0.0
    %v447 = vand.u32 %v23, 4294901760
    %448 = vmatpush1.msra.mxu0 %v447
    %449 = vmatprep.subr.mxu0 0.0
    %450 = vmatpush2.msra.mxu0 0.0
    %451 = vmatprep.subr.mxu0 0.0
    %452 = vmatpush2.msra.mxu0 0.0
    %453 = vmatprep.subr.mxu0 0.0
    %454 = vmatpush2.msra.mxu0 0.0
    %455 = vmatprep.subr.mxu0 0.0
    %456 = vmatpush2.msra.mxu0 0.0
    %457 = vmatprep.subr.mxu0 0.0
    %458 = vmatpush2.msra.mxu0 0.0
    %459 = vmatprep.subr.mxu0 0.0
    %460 = vmatpush2.msra.mxu0 0.0
    %461 = vmatprep.subr.mxu0 0.0
    %462 = vmatpush2.msra.mxu0 0.0
    %463 = vmatprep.subr.mxu0 0.0
    %464 = vmatpush2.msra.mxu0 0.0
    %465 = vmatprep.subr.mxu0 0.0
    %466 = vmatpush2.msra.mxu0 0.0
    %467 = vmatprep.subr.mxu0 0.0
    %468 = vmatpush2.msra.mxu0 0.0
    %469 = vmatprep.subr.mxu0 0.0
    %470 = vmatpush2.msra.mxu0 0.0
    %471 = vmatprep.subr.mxu0 0.0
    %472 = vmatpush2.msra.mxu0 0.0
    %473 = vmatprep.subr.mxu0 0.0
    %474 = vmatpush2.msra.mxu0 0.0
    %475 = vmatprep.subr.mxu0 0.0
    %476 = vmatpush2.msra.mxu0 0.0
    %477 = vmatprep.subr.mxu0 0.0
    %478 = vmatpush2.msra.mxu0 0.0
    %479 = vmatprep.subr.mxu0 0.0
    %480 = vmatpush2.msra.mxu0 0.0
    %481 = vmatprep.mubr.f32.mxu0 0.0
    %v482 = vand.u32 %v27, 4294901760
    %483 = vmatmul.mubr.f32.gmra.mxu0 %v482
    %v484 = vpop.f32.mrf.mxu0
    %v485 = vadd.f32 %v412, %v484
    %v486 = vpop.f32.mrf.mxu0
    %487 = vdwg.mxu0
    %vm488 = vcmask 64512
    %v489 = vsel %vm488, %v485, -inf
    %490 = vmax.xlane.f32.xlu0 %v489
    %v491 = vpop.xlane.xlu0 %490
    %v492 = vcvt.s32.f32 %v17
    %vm493 = vcmp.eq.f32.partialorder %v485, %v491
    %v494 = vsel %vm493, %v492, 8.0
    %v495 = vsel %vm488, %v494, inf
    %496 = vmin.xlane.f32.xlu0 %v495
    %v497 = vpop.xlane.xlu0 %496
    %v498 = vlaneseq
    %v499 = vshrl.u32 %v498, 7
    %vm500 = vcmp.eq.s32.totalorder %v499, %v17
    %v501 = vsel %vm500, %v491, 0.0
    %v502 = vsel %vm488, %v501, 0.0
    %v503 = vrot.slane %v502, 4
    %v504 = vadd.f32 %v502, %v503
    %v505 = vrot.slane %v504, 2
    %v506 = vadd.f32 %v504, %v505
    %v507 = vrot.slane %v506, 1
    %v508 = vadd.f32 %v506, %v507
    %v509 = vsel %vm500, %v497, 0.0
    %v510 = vsel %vm488, %v509, 0.0
    %v511 = vrot.slane %v510, 4
    %v512 = vadd.f32 %v510, %v511
    %v513 = vrot.slane %v512, 2
    %v514 = vadd.f32 %v512, %v513
    %v515 = vrot.slane %v514, 1
    %v516 = vadd.f32 %v514, %v515
    %vm517 = vcmask 57344
    %518 = vst.msk [vmem:[#allocation4] sm:$0x1] %vm517, %v508
    %v519 = vcvt.f32.s32.to.zero.pseudo %v516
    %520 = vst.msk [vmem:[#allocation2] sm:$0x1] %vm517, %v519
    // Predicated region
    $region10: #{tpu_custom_call.1} parent=1 // pred_check
      _
    $region11: #{tpu_custom_call.1} parent=1 // pred_check_branch
      %522 = sbr.rel (0) target = $region13
    $region12: #{tpu_custom_call.1} parent=1 // pred_region
      %s524 = ssub.s32 16, 16
      %525 = vsyncadd [#allocation3], %s524
      %s527 = sshll.u32 [#allocation2], 4
      %s528 = int_to_ptr.vmem [resolvable:$true] %s527
      %530 = dma.vmem_to_hbm [thread:$0]  %s528, 16, %s2, [#allocation3]
    $region13: #{tpu_custom_call.1} parent=1 // pred_fallthru
      _
    // Predicated region
    $region14: #{tpu_custom_call.1} parent=1 // pred_check
      _
    $region15: #{tpu_custom_call.1} parent=1 // pred_check_branch
      %532 = sbr.rel (0) target = $region17
    $region16: #{tpu_custom_call.1} parent=1 // pred_region
      %s534 = ssub.s32 16, 16
      %535 = vsyncadd [#allocation5], %s534
      %s537 = sshll.u32 [#allocation4], 4
      %s538 = int_to_ptr.vmem [resolvable:$true] %s537
      %540 = dma.vmem_to_hbm [thread:$0]  %s538, 16, %s3, [#allocation5]
    $region17: #{tpu_custom_call.1} parent=1 // pred_fallthru
      _
    // Predicated region
    $region18: #{tpu_custom_call.1} parent=1 // pred_check
      _
    $region19: #{tpu_custom_call.1} parent=1 // pred_check_branch
      %542 = sbr.rel (0) target = $region21
    $region20: #{tpu_custom_call.1} parent=1 // pred_region
      %543 = dma.done [#allocation3], 16
    $region21: #{tpu_custom_call.1} parent=1 // pred_fallthru
      _
    // Predicated region
    $region22: #{tpu_custom_call.1} parent=1 // pred_check
      _
    $region23: #{tpu_custom_call.1} parent=1 // pred_check_branch
      %545 = sbr.rel (0) target = $region25
    $region24: #{tpu_custom_call.1} parent=1 // pred_region
      %546 = dma.done [#allocation5], 16
    $region25: #{tpu_custom_call.1} parent=1 // pred_fallthru
      _
    %547 = vsyncpa [#allocation3], 1
    %548 = vsyncpa [#allocation5], 1

</llo_original>
